<compile_context>
chip_gen: v6e
topology: v6e:2x2x1
jax: 0.10.0
libtpu: 0.0.40
codegen_flags: <defaults>
</compile_context>

<pallas_src>
import functools

import jax
import jax.numpy as jnp
from jax.experimental import pallas as pl
from jax.experimental.pallas import tpu as pltpu


# ---------------------------------------------------------------------------
# Pass 1: QKV projection  (one lane-dense (N, C) x (C, 3C) matmul per batch)
# ---------------------------------------------------------------------------
def _qkv_kernel(x_ref, w_qkv_ref, q_ref, k_ref, v_ref):
    C = q_ref.shape[-1]
    x = x_ref[0]                                   # (N, C), native dtype
    qkv = jnp.dot(x, w_qkv_ref[...],
                  preferred_element_type=jnp.float32)        # (N, 3C) f32 acc
    q_ref[0] = qkv[:, 0 * C:1 * C].astype(q_ref.dtype)
    k_ref[0] = qkv[:, 1 * C:2 * C].astype(k_ref.dtype)
    v_ref[0] = qkv[:, 2 * C:3 * C].astype(v_ref.dtype)


# ---------------------------------------------------------------------------
# Pass 2: attention (all heads batched) + output projection, per query tile
# ---------------------------------------------------------------------------
def _attn_proj_kernel(q_ref, k_ref, v_ref, w_proj_ref, b_proj_ref, o_ref,
                      *, num_heads: int, head_dim: int, scale: float,
                      approx_recip: bool):
    H, hd = num_heads, head_dim
    C = H * hd
    TQ = q_ref.shape[1]
    N = k_ref.shape[1]

    # Fold the softmax scale into q (cheaper than scaling the (TQ, N) logits).
    q = q_ref[0] * jnp.array(scale, dtype=q_ref.dtype)       # (TQ, C)

    # Single head-split relayout per tensor (replaces per-head lane slices).
    qh = jnp.transpose(q.reshape(TQ, H, hd), (1, 0, 2))       # (H, TQ, hd)
    kh = jnp.transpose(k_ref[0].reshape(N, H, hd), (1, 0, 2))  # (H, N, hd)
    vh = jnp.transpose(v_ref[0].reshape(N, H, hd), (1, 0, 2))  # (H, N, hd)

    # Batched logits: contraction on the last dim of both operands, so no
    # materialized K^T.  f32 accumulation on the MXU.
    s = jnp.einsum("hqd,hkd->hqk", qh, kh,
                   preferred_element_type=jnp.float32)        # (H, TQ, N) f32

    # Numerically-stable softmax; the divide goes to the EUP via reciprocal.
    s = s - jnp.max(s, axis=-1, keepdims=True)
    p = jnp.exp(s)
    denom = jnp.sum(p, axis=-1, keepdims=True)
    p = p * pl.reciprocal(denom, approx=approx_recip)

    # Weighted values, batched over heads.
    ctx = jnp.einsum("hqk,hkd->hqd", p.astype(vh.dtype), vh,
                     preferred_element_type=jnp.float32)      # (H, TQ, hd)

    # Merge heads once (single relayout) -> lane-dense (TQ, C) slab.
    merged = jnp.transpose(ctx, (1, 0, 2)).reshape(TQ, C)

    # Output projection with bias; one lane-dense store.
    y = jnp.dot(merged.astype(w_proj_ref.dtype), w_proj_ref[...],
                preferred_element_type=jnp.float32)
    y = y + b_proj_ref[...].astype(jnp.float32)
    o_ref[0] = y.astype(o_ref.dtype)


def _choose_q_tile(N, q_tile):
    """Pick a query-tile size that divides N exactly (no padded blocks)."""
    if q_tile is not None and N % q_tile == 0:
        return q_tile
    for t in (512, 256, 128):
        if N % t == 0:
            return t
    return N  # fall back to a single query tile per batch element


def attention_forward(x, w_qkv, w_proj, b_proj, num_heads,
                      *, q_tile=None, approx_recip=True):
    """x: (B, N, C); w_qkv: (C, 3C); w_proj: (C, C); b_proj: (C,)."""
    B, N, C = x.shape
    head_dim = C // num_heads
    scale = head_dim ** (-0.5)

    vmem_limit = 48 * 1024 * 1024  # headroom on v5e/v6e (128 MiB) and v7x (64 MiB)

    # ---- Pass 1: QKV projection --------------------------------------------
    qkv_call = pl.pallas_call(
        _qkv_kernel,
        out_shape=(jax.ShapeDtypeStruct((B, N, C), x.dtype),
                   jax.ShapeDtypeStruct((B, N, C), x.dtype),
                   jax.ShapeDtypeStruct((B, N, C), x.dtype)),
        grid_spec=pltpu.PrefetchScalarGridSpec(
            num_scalar_prefetch=0,
            grid=(B,),
            in_specs=[
                pl.BlockSpec((1, N, C), lambda b: (b, 0, 0)),
                pl.BlockSpec((C, 3 * C), lambda b: (0, 0)),
            ],
            out_specs=[
                pl.BlockSpec((1, N, C), lambda b: (b, 0, 0)),
                pl.BlockSpec((1, N, C), lambda b: (b, 0, 0)),
                pl.BlockSpec((1, N, C), lambda b: (b, 0, 0)),
            ],
        ),
        compiler_params=pltpu.CompilerParams(
            dimension_semantics=("parallel",),
            vmem_limit_bytes=vmem_limit),
    )
    q, k, v = qkv_call(x, w_qkv)

    # ---- Pass 2: attention + output projection -----------------------------
    tq = _choose_q_tile(N, q_tile)
    n_q_tiles = N // tq

    kernel2 = functools.partial(
        _attn_proj_kernel,
        num_heads=num_heads,
        head_dim=head_dim,
        scale=scale,
        approx_recip=approx_recip,
    )

    out = pl.pallas_call(
        kernel2,
        out_shape=jax.ShapeDtypeStruct((B, N, C), x.dtype),
        grid_spec=pltpu.PrefetchScalarGridSpec(
            num_scalar_prefetch=0,
            grid=(B, n_q_tiles),
            in_specs=[
                pl.BlockSpec((1, tq, C), lambda b, qi: (b, qi, 0)),   # q tile
                pl.BlockSpec((1, N, C), lambda b, qi: (b, 0, 0)),     # full K
                pl.BlockSpec((1, N, C), lambda b, qi: (b, 0, 0)),     # full V
                pl.BlockSpec((C, C), lambda b, qi: (0, 0)),           # Wproj
                pl.BlockSpec((1, C), lambda b, qi: (0, 0)),           # bproj
            ],
            out_specs=pl.BlockSpec((1, tq, C), lambda b, qi: (b, qi, 0)),
        ),
        compiler_params=pltpu.CompilerParams(
            dimension_semantics=("parallel", "parallel"),
            vmem_limit_bytes=vmem_limit),
    )(q, k, v, w_proj, b_proj.reshape(1, C))
    return out


def attention_reference(x, w_qkv, w_proj, b_proj, num_heads):
    """Pure-JAX reference mirroring the PyTorch forward."""
    B, N, C = x.shape
    hd = C // num_heads
    scale = hd ** (-0.5)
    qkv = x @ w_qkv                                          # (B, N, 3C)
    q, k, v = jnp.split(qkv, 3, axis=-1)

    def split_heads(t):
        return t.reshape(B, N, num_heads, hd).transpose(0, 2, 1, 3)

    q, k, v = split_heads(q), split_heads(k), split_heads(v)
    attn = jnp.einsum("bhqd,bhkd->bhqk", q, k) * scale
    attn = jax.nn.softmax(attn, axis=-1)
    out = jnp.einsum("bhqk,bhkd->bhqd", attn, v)
    out = out.transpose(0, 2, 1, 3).reshape(B, N, C)
    return out @ w_proj + b_proj


if __name__ == "__main__":
    # Small shapes consistent with the module: B=2, N=8 tokens, C=32 dim,
    # num_heads=4 -> head_dim=8.  (Real ViT dims C>=256 are lane-dense; this
    # toy C=32 necessarily runs on padded vregs.)
    B, N, C = 2, 8, 32
    num_heads = 4

    key = jax.random.PRNGKey(0)
    kx, kqkv, kproj, kbias = jax.random.split(key, 4)

    x = jax.random.normal(kx, (B, N, C), dtype=jnp.float32)
    # Deterministic parameter init (synthetic weights, not a checkpoint).
    w_qkv = 0.05 * jax.random.normal(kqkv, (C, 3 * C), dtype=jnp.float32)
    w_proj = 0.05 * jax.random.normal(kproj, (C, C), dtype=jnp.float32)
    b_proj = 0.01 * jax.random.normal(kbias, (C,), dtype=jnp.float32)

    out = attention_forward(x, w_qkv, w_proj, b_proj, num_heads)
    out = jax.block_until_ready(out)

    ref = attention_reference(x, w_qkv, w_proj, b_proj, num_heads)
    assert out.shape == (B, N, C)
    # Tolerance accounts for the approximate (EUP) reciprocal in the softmax
    # denominator (~bf16-level relative error on an O(0.1)-magnitude output).
    assert jnp.allclose(out, ref, atol=5e-3, rtol=5e-3), "mismatch vs reference"

    print("KERNEL_OK")
</pallas_src>

<mosaic_0001>
module attributes {stable_mosaic.version = 11 : i64} {
  func.func @_qkv_kernel(%arg0: i32, %arg1: memref<1x8x32xf32, #tpu.memory_space<vmem>>, %arg2: memref<32x96xf32, #tpu.memory_space<vmem>>, %arg3: memref<1x8x32xf32, #tpu.memory_space<vmem>>, %arg4: memref<1x8x32xf32, #tpu.memory_space<vmem>>, %arg5: memref<1x8x32xf32, #tpu.memory_space<vmem>>) attributes {dimension_semantics = [#tpu.dimension_semantics<parallel>], iteration_bounds = array<i64: 2>, scalar_prefetch = 0 : i64, scratch_operands = 0 : i64, tpu.core_type = #tpu.core_type<tc>, window_params = [{transform_indices = @transform_0, window_bounds = array<i64: 1, 8, 32>}, {pipeline_mode = #tpu.pipeline_mode<synchronous>, transform_indices = @transform_1, window_bounds = array<i64: 32, 96>}, {transform_indices = @transform_2, window_bounds = array<i64: 1, 8, 32>}, {transform_indices = @transform_3, window_bounds = array<i64: 1, 8, 32>}, {transform_indices = @transform_4, window_bounds = array<i64: 1, 8, 32>}]} {
    %c0 = arith.constant 0 : index
    %c0_0 = arith.constant 0 : index
    %c0_1 = arith.constant 0 : index
    %0 = vector.load %arg1[%c0, %c0_0, %c0_1] : memref<1x8x32xf32, #tpu.memory_space<vmem>>, vector<1x8x32xf32>
    %1 = vector.shape_cast %0 : vector<1x8x32xf32> to vector<8x32xf32>
    %c0_2 = arith.constant 0 : index
    %c0_3 = arith.constant 0 : index
    %2 = vector.load %arg2[%c0_2, %c0_3] : memref<32x96xf32, #tpu.memory_space<vmem>>, vector<32x96xf32>
    %cst = arith.constant dense<0.000000e+00> : vector<8x96xf32>
    %3 = tpu.matmul %1, %2, %cst {dimension_numbers = #tpu.dot_dimension_numbers<[1], [0], [0], [1], [0, 0, 1, 1], [], []>} : vector<8x32xf32>, vector<32x96xf32>, vector<8x96xf32> -> vector<8x96xf32>
    %4 = vector.extract_strided_slice %3 {offsets = [0, 0], sizes = [8, 32], strides = [1, 1]} : vector<8x96xf32> to vector<8x32xf32>
    %c0_4 = arith.constant 0 : index
    %c0_5 = arith.constant 0 : index
    %c0_6 = arith.constant 0 : index
    %5 = vector.load %arg3[%c0_4, %c0_5, %c0_6] : memref<1x8x32xf32, #tpu.memory_space<vmem>>, vector<1x8x32xf32>
    %6 = vector.shape_cast %5 : vector<1x8x32xf32> to vector<8x32xf32>
    %7 = vector.shape_cast %4 : vector<8x32xf32> to vector<1x8x32xf32>
    tpu.vector_store %arg3[%c0_4, %c0_5, %c0_6], %7 {strides = array<i32>} : memref<1x8x32xf32, #tpu.memory_space<vmem>>, vector<1x8x32xf32>,
    %8 = vector.extract_strided_slice %3 {offsets = [0, 32], sizes = [8, 32], strides = [1, 1]} : vector<8x96xf32> to vector<8x32xf32>
    %c0_7 = arith.constant 0 : index
    %c0_8 = arith.constant 0 : index
    %c0_9 = arith.constant 0 : index
    %9 = vector.load %arg4[%c0_7, %c0_8, %c0_9] : memref<1x8x32xf32, #tpu.memory_space<vmem>>, vector<1x8x32xf32>
    %10 = vector.shape_cast %9 : vector<1x8x32xf32> to vector<8x32xf32>
    %11 = vector.shape_cast %8 : vector<8x32xf32> to vector<1x8x32xf32>
    tpu.vector_store %arg4[%c0_7, %c0_8, %c0_9], %11 {strides = array<i32>} : memref<1x8x32xf32, #tpu.memory_space<vmem>>, vector<1x8x32xf32>,
    %12 = vector.extract_strided_slice %3 {offsets = [0, 64], sizes = [8, 32], strides = [1, 1]} : vector<8x96xf32> to vector<8x32xf32>
    %c0_10 = arith.constant 0 : index
    %c0_11 = arith.constant 0 : index
    %c0_12 = arith.constant 0 : index
    %13 = vector.load %arg5[%c0_10, %c0_11, %c0_12] : memref<1x8x32xf32, #tpu.memory_space<vmem>>, vector<1x8x32xf32>
    %14 = vector.shape_cast %13 : vector<1x8x32xf32> to vector<8x32xf32>
    %15 = vector.shape_cast %12 : vector<8x32xf32> to vector<1x8x32xf32>
    tpu.vector_store %arg5[%c0_10, %c0_11, %c0_12], %15 {strides = array<i32>} : memref<1x8x32xf32, #tpu.memory_space<vmem>>, vector<1x8x32xf32>,
    return
  }
  func.func @transform_0(%arg0: i32) -> (i32, i32, i32) {
    %c0_i32 = arith.constant 0 : i32
    %c0_i32_0 = arith.constant 0 : i32
    %c0_i32_1 = arith.constant 0 : i32
    return %arg0, %c0_i32, %c0_i32_0 : i32, i32, i32
  }
  func.func @transform_1(%arg0: i32) -> (i32, i32) {
    %c0_i32 = arith.constant 0 : i32
    %c0_i32_0 = arith.constant 0 : i32
    %c0_i32_1 = arith.constant 0 : i32
    return %c0_i32, %c0_i32_0 : i32, i32
  }
  func.func @transform_2(%arg0: i32) -> (i32, i32, i32) {
    %c0_i32 = arith.constant 0 : i32
    %c0_i32_0 = arith.constant 0 : i32
    %c0_i32_1 = arith.constant 0 : i32
    return %arg0, %c0_i32, %c0_i32_0 : i32, i32, i32
  }
  func.func @transform_3(%arg0: i32) -> (i32, i32, i32) {
    %c0_i32 = arith.constant 0 : i32
    %c0_i32_0 = arith.constant 0 : i32
    %c0_i32_1 = arith.constant 0 : i32
    return %arg0, %c0_i32, %c0_i32_0 : i32, i32, i32
  }
  func.func @transform_4(%arg0: i32) -> (i32, i32, i32) {
    %c0_i32 = arith.constant 0 : i32
    %c0_i32_0 = arith.constant 0 : i32
    %c0_i32_1 = arith.constant 0 : i32
    return %arg0, %c0_i32, %c0_i32_0 : i32, i32, i32
  }
}

</mosaic_0001>

<llo_original>
// kernel: tpu_custom_call.1
$region0: #{tpu_custom_call.1}
  #allocation0 [shape = 'u32[]', space=smem, size = 0x4, offset = 0x4, fixed_abs, tag = 'smem constant byte address 0x4 - core index']
  #allocation1 [shape = 'u32[144,128]{1,0:T(1,128)}', space=vmem, size = 0x12000, scoped, tag = 'internal scratch']
  %s0 = inlined_call_operand.hbm [shape: f32[2,8,32], index: 0, kind: input, shape index: {}]
  %s1 = inlined_call_operand.hbm [shape: f32[32,96], index: 1, kind: input, shape index: {}]
  %s2 = inlined_call_operand.hbm [shape: f32[2,8,32], index: 2, kind: output, shape index: {0}]
  %s3 = inlined_call_operand.hbm [shape: f32[2,8,32], index: 3, kind: output, shape index: {1}]
  %s4 = inlined_call_operand.hbm [shape: f32[2,8,32], index: 4, kind: output, shape index: {2}]
  %5 = xla_tuple %s2, %s3, %s4
  %s6 = sld [smem:[#allocation0]]
  $region65: #{tpu_custom_call.1} parent=0
    _
  %s8 = ssub.s32 1, %s6
  %s9 = scalar_select 0, %s8, %s6
  $region1: #{tpu_custom_call.1} parent=0
    #allocation2 [shape = 'u8[8192]{0}', space=vmem, size = 0x2000, scoped, tag = 'input window, operand 0']
    #allocation3 [shape = 's32[2]{0}', space=sflag, size = 0x8, scoped, tag = 'scoped memory for tpu_custom_call.1']
    #allocation4 [shape = 's32[2]{0}', space=sflag, size = 0x8, scoped, tag = 'scoped memory for tpu_custom_call.1']
    #allocation5 [shape = 'u8[16384]{0}', space=vmem, size = 0x4000, scoped, tag = 'input window, operand 1, single buffered']
    #allocation6 [shape = 's32[1]{0}', space=sflag, size = 0x4, scoped, tag = 'scoped memory for tpu_custom_call.1']
    #allocation7 [shape = 'u8[8192]{0}', space=vmem, size = 0x2000, scoped, tag = 'output window, operand 0']
    #allocation8 [shape = 'u8[8192]{0}', space=vmem, size = 0x2000, scoped, tag = 'output window, operand 1']
    #allocation9 [shape = 's32[2]{0}', space=sflag, size = 0x8, scoped, tag = 'scoped memory for tpu_custom_call.1']
    #allocation10 [shape = 'u8[8192]{0}', space=vmem, size = 0x2000, scoped, tag = 'output window, operand 2']
    %10 = vsyncpa [#allocation3], 0
    %s11 = scalar_lea.sflag [#allocation3], 1
    %12 = vsyncpa %s11, 0
    %13 = vsyncpa [#allocation6], 0
    %14 = vsyncpa [#allocation4], 0
    %s15 = scalar_lea.sflag [#allocation4], 1
    %16 = vsyncpa %s15, 0
    %17 = vsyncpa [#allocation9], 0
    %s18 = scalar_lea.sflag [#allocation9], 1
    %19 = vsyncpa %s18, 0
    loop: start=0, step=1, limit=4
    $region2: #{tpu_custom_call.1} parent=1 // loop_pre_header
      _
    $region3: #{tpu_custom_call.1} parent=1 // loop_header
      %s21 = sphi 0, %s25
      %p22 = scmp.ge.s32.totalorder %s21, 4
      %s31 = sphi 0, %s33
      %s34 = sphi 0, %s31
      %s35 = sphi 0, %s34
      %s51 = sphi 0, %s35
      %s55 = sphi 0, %s55
      %s57 = sphi 0, %s55
      %s58 = sphi 0, %s57
      %s72 = sphi 0, %s58
      %s78 = sphi 0, %s80
      %s81 = sphi 0, %s78
      %s82 = sphi 0, %s81
      %s98 = sphi 0, %s82
      %s104 = sphi 0, %s106
      %s107 = sphi 0, %s104
      %s108 = sphi 0, %s107
      %s124 = sphi 0, %s108
      %s130 = sphi 0, %s132
      %s133 = sphi 0, %s130
      %s134 = sphi 0, %s133
      %s150 = sphi 0, %s134
    $region4: #{tpu_custom_call.1} parent=1 // loop_header_branch
      %24 = sbr.rel (%p22) target = $region8
    $region5: #{tpu_custom_call.1} parent=1 // loop_body
      %s26 = ssub.s32 %s21, 1
      %s27 = ssub.s32 %s21, 2
      %s28 = sadd.s32 %s21, 1
      %s29 = ssub.s32 %s21, %s28
      %p30 = scmp.eq.s32.totalorder %s29, 0
      %s32 = sadd.s32 %s31, 1
      %s33 = scalar_select %p30, %s31, %s32
      %p36 = pneg %p30
      %p37 = scmp.eq.s32.totalorder %s21, 1
      %p38 = por %p36, %p37
      %p39 = scmp.ne.s32.totalorder %s31, %s34
      %p40 = scmp.eq.s32.totalorder %s21, 0
      %p41 = por %p39, %p40
      %p42 = scmp.ne.s32.totalorder %s31, %s34
      %p43 = scmp.eq.s32.totalorder %s26, 1
      %p44 = por %p42, %p43
      %p45 = scmp.ne.s32.totalorder %s34, %s35
      %p46 = scmp.eq.s32.totalorder %s26, 0
      %p47 = por %p45, %p46
      %p48 = scmp.ne.s32.totalorder %s34, %s35
      %p49 = scmp.eq.s32.totalorder %s27, 1
      %p50 = por %p48, %p49
      %p52 = scmp.ne.s32.totalorder %s35, %s51
      %p53 = scmp.eq.s32.totalorder %s27, 0
      %p54 = por %p52, %p53
      %s56 = sadd.s32 %s55, 1
      %p59 = scmp.eq.s32.totalorder %s21, 1
      %p60 = scmp.ne.s32.totalorder %s55, %s57
      %p61 = scmp.eq.s32.totalorder %s21, 0
      %p62 = por %p60, %p61
      %p63 = scmp.ne.s32.totalorder %s55, %s57
      %p64 = scmp.eq.s32.totalorder %s26, 1
      %p65 = por %p63, %p64
      %p66 = scmp.ne.s32.totalorder %s57, %s58
      %p67 = scmp.eq.s32.totalorder %s26, 0
      %p68 = por %p66, %p67
      %p69 = scmp.ne.s32.totalorder %s57, %s58
      %p70 = scmp.eq.s32.totalorder %s27, 1
      %p71 = por %p69, %p70
      %p73 = scmp.ne.s32.totalorder %s58, %s72
      %p74 = scmp.eq.s32.totalorder %s27, 0
      %p75 = por %p73, %p74
      %s76 = ssub.s32 %s21, %s28
      %p77 = scmp.eq.s32.totalorder %s76, 0
      %s79 = sadd.s32 %s78, 1
      %s80 = scalar_select %p77, %s78, %s79
      %p83 = pneg %p77
      %p84 = scmp.eq.s32.totalorder %s21, 1
      %p85 = por %p83, %p84
      %p86 = scmp.ne.s32.totalorder %s78, %s81
      %p87 = scmp.eq.s32.totalorder %s21, 0
      %p88 = por %p86, %p87
      %p89 = scmp.ne.s32.totalorder %s78, %s81
      %p90 = scmp.eq.s32.totalorder %s26, 1
      %p91 = por %p89, %p90
      %p92 = scmp.ne.s32.totalorder %s81, %s82
      %p93 = scmp.eq.s32.totalorder %s26, 0
      %p94 = por %p92, %p93
      %p95 = scmp.ne.s32.totalorder %s81, %s82
      %p96 = scmp.eq.s32.totalorder %s27, 1
      %p97 = por %p95, %p96
      %p99 = scmp.ne.s32.totalorder %s82, %s98
      %p100 = scmp.eq.s32.totalorder %s27, 0
      %p101 = por %p99, %p100
      %s102 = ssub.s32 %s21, %s28
      %p103 = scmp.eq.s32.totalorder %s102, 0
      %s105 = sadd.s32 %s104, 1
      %s106 = scalar_select %p103, %s104, %s105
      %p109 = pneg %p103
      %p110 = scmp.eq.s32.totalorder %s21, 1
      %p111 = por %p109, %p110
      %p112 = scmp.ne.s32.totalorder %s104, %s107
      %p113 = scmp.eq.s32.totalorder %s21, 0
      %p114 = por %p112, %p113
      %p115 = scmp.ne.s32.totalorder %s104, %s107
      %p116 = scmp.eq.s32.totalorder %s26, 1
      %p117 = por %p115, %p116
      %p118 = scmp.ne.s32.totalorder %s107, %s108
      %p119 = scmp.eq.s32.totalorder %s26, 0
      %p120 = por %p118, %p119
      %p121 = scmp.ne.s32.totalorder %s107, %s108
      %p122 = scmp.eq.s32.totalorder %s27, 1
      %p123 = por %p121, %p122
      %p125 = scmp.ne.s32.totalorder %s108, %s124
      %p126 = scmp.eq.s32.totalorder %s27, 0
      %p127 = por %p125, %p126
      %s128 = ssub.s32 %s21, %s28
      %p129 = scmp.eq.s32.totalorder %s128, 0
      %s131 = sadd.s32 %s130, 1
      %s132 = scalar_select %p129, %s130, %s131
      %p135 = pneg %p129
      %p136 = scmp.eq.s32.totalorder %s21, 1
      %p137 = por %p135, %p136
      %p138 = scmp.ne.s32.totalorder %s130, %s133
      %p139 = scmp.eq.s32.totalorder %s21, 0
      %p140 = por %p138, %p139
      %p141 = scmp.ne.s32.totalorder %s130, %s133
      %p142 = scmp.eq.s32.totalorder %s26, 1
      %p143 = por %p141, %p142
      %p144 = scmp.ne.s32.totalorder %s133, %s134
      %p145 = scmp.eq.s32.totalorder %s26, 0
      %p146 = por %p144, %p145
      %p147 = scmp.ne.s32.totalorder %s133, %s134
      %p148 = scmp.eq.s32.totalorder %s27, 1
      %p149 = por %p147, %p148
      %p151 = scmp.ne.s32.totalorder %s134, %s150
      %p152 = scmp.eq.s32.totalorder %s27, 0
      %p153 = por %p151, %p152
      %p154 = scmp.le.s32.totalorder 1, %s21
      %p155 = scmp.lt.s32.totalorder %s21, 3
      %p156 = pnand %p154, %p155
      %p157 = pneg %p156
      // Predicated region
      $region9: #{tpu_custom_call.1} parent=5 // pred_check
        _
      $region10: #{tpu_custom_call.1} parent=5 // pred_check_branch
        %159 = sbr.rel (%p156) target = $region12
      $region11: #{tpu_custom_call.1} parent=5 // pred_region
        %s160 = ssub.s32 %s21, 1
        // Predicated region
        $region13: #{tpu_custom_call.1} parent=11 // pred_check
          %p161 = pneg %p68
        $region14: #{tpu_custom_call.1} parent=11 // pred_check_branch
          %163 = sbr.rel (%p161) target = $region16
        $region15: #{tpu_custom_call.1} parent=11 // pred_region
          %s165 = ssub.s32 512, 512
          %166 = vsyncadd [#allocation6], %s165
          %s167 = sshll.u32 [#allocation5], 4
          %s168 = int_to_ptr.vmem [resolvable:$true] %s167
          %173 = dma.hbm_to_vmem [thread:$0]  %s1, 512, %s168, [#allocation6], 128, 128, 8
        $region16: #{tpu_custom_call.1} parent=11 // pred_fallthru
          _
      $region12: #{tpu_custom_call.1} parent=5 // pred_fallthru
        _
      %p174 = scmp.lt.s32.totalorder %s21, 2
      // Predicated region
      $region17: #{tpu_custom_call.1} parent=5 // pred_check
        %p175 = pneg %p174
      $region18: #{tpu_custom_call.1} parent=5 // pred_check_branch
        %177 = sbr.rel (%p175) target = $region20
      $region19: #{tpu_custom_call.1} parent=5 // pred_region
        // Predicated region
        $region21: #{tpu_custom_call.1} parent=19 // pred_check
          %p178 = pneg %p41
        $region22: #{tpu_custom_call.1} parent=19 // pred_check_branch
          %180 = sbr.rel (%p178) target = $region24
        $region23: #{tpu_custom_call.1} parent=19 // pred_region
          %s181 = sand.u32 %s31, 1
          %s182 = scalar_lea.sflag [#allocation3], %s181
          %s183 = sand.u32 %s31, 1
          %s184 = smul.addr %s183, 8
          %s185 = scalar_lea.vmem [#allocation2], %s184
          %s187 = ssub.s32 128, 128
          %188 = vsyncadd %s182, %s187
          %s189 = smul.addr %s21, 128
          %s190 = scalar_lea.hbm %s0, %s189
          %s192 = sshll.u32 %s185, 4
          %s193 = int_to_ptr.vmem [resolvable:$true] %s192
          %195 = dma.hbm_to_vmem [thread:$0]  %s190, 128, %s193, %s182
        $region24: #{tpu_custom_call.1} parent=19 // pred_fallthru
          _
      $region20: #{tpu_custom_call.1} parent=5 // pred_fallthru
        _
      %p196 = scmp.le.s32.totalorder 1, %s21
      %p197 = scmp.lt.s32.totalorder %s21, 3
      %p198 = pnand %p196, %p197
      %p199 = pneg %p198
      // Predicated region
      $region25: #{tpu_custom_call.1} parent=5 // pred_check
        _
      $region26: #{tpu_custom_call.1} parent=5 // pred_check_branch
        %201 = sbr.rel (%p198) target = $region28
      $region27: #{tpu_custom_call.1} parent=5 // pred_region
        %s202 = ssub.s32 %s21, 1
        %s203 = sand.u32 %s34, 1
        %s204 = scalar_lea.sflag [#allocation3], %s203
        %s205 = sand.u32 %s34, 1
        %s206 = smul.addr %s205, 8
        %s207 = scalar_lea.vmem [#allocation2], %s206
        // Predicated region
        $region29: #{tpu_custom_call.1} parent=27 // pred_check
          %p208 = pneg %p47
        $region30: #{tpu_custom_call.1} parent=27 // pred_check_branch
          %210 = sbr.rel (%p208) target = $region32
        $region31: #{tpu_custom_call.1} parent=27 // pred_region
          %211 = dma.done %s204, 128
        $region32: #{tpu_custom_call.1} parent=27 // pred_fallthru
          _
        // Predicated region
        $region33: #{tpu_custom_call.1} parent=27 // pred_check
          %p212 = pneg %p68
        $region34: #{tpu_custom_call.1} parent=27 // pred_check_branch
          %214 = sbr.rel (%p212) target = $region36
        $region35: #{tpu_custom_call.1} parent=27 // pred_region
          %215 = dma.done [#allocation6], 512
        $region36: #{tpu_custom_call.1} parent=27 // pred_fallthru
          _
        %s216 = sand.u32 %s34, 1
        %s217 = scalar_lea.sflag [#allocation3], %s216
        %s218 = sand.u32 %s34, 1
        %s219 = smul.addr %s218, 8
        %s220 = scalar_lea.vmem [#allocation2], %s219
        %p221 = pneg %p47
        %p222 = pneg %p44
        %p223 = pneg %p68
        %p224 = pneg %p65
        %p225 = pneg %p94
        %p226 = pneg %p91
        %s227 = sand.u32 %s81, 1
        %s228 = scalar_lea.sflag [#allocation4], %s227
        %s229 = sand.u32 %s81, 1
        %s230 = smul.addr %s229, 8
        %s231 = scalar_lea.vmem [#allocation7], %s230
        %p232 = pneg %p120
        %p233 = pneg %p117
        %s234 = sand.u32 %s26, 1
        %s235 = scalar_lea.sflag [#allocation9], %s234
        %s236 = sand.u32 %s107, 1
        %s237 = smul.addr %s236, 8
        %s238 = scalar_lea.vmem [#allocation8], %s237
        %p239 = pneg %p146
        %p240 = pneg %p143
        %s241 = sand.u32 %s26, 1
        %s242 = scalar_lea.sflag [#allocation9], %s241
        %s243 = sand.u32 %s133, 1
        %s244 = smul.addr %s243, 8
        %s245 = scalar_lea.vmem [#allocation10], %s244
        %v246 = vld [vmem:[%s207] sm:$0xff]
        %v247 = vld [vmem:[#allocation5] sm:$0xff]
        %v248 = vld [vmem:[#allocation5 + $0x8] sm:$0xff]
        %v249 = vld [vmem:[#allocation5 + $0x10] sm:$0xff]
        %v250 = vld [vmem:[#allocation5 + $0x18] sm:$0xff]
        %vm251 = vcmask 261120
        %v253 = vsel %vm251, %v246, 0
        %255 = vmatprep.subr.mxu0 0.0
        %256 = vmatpush1.msra.mxu0 0.0
        %257 = vmatprep.subr.mxu0 0.0
        %258 = vmatpush1.msra.mxu0 0.0
        %259 = vmatprep.subr.mxu0 0.0
        %260 = vmatpush1.msra.mxu0 0.0
        %261 = vmatprep.subr.mxu0 0.0
        %262 = vmatpush1.msra.mxu0 0.0
        %263 = vmatprep.subr.mxu0 0.0
        %264 = vmatpush1.msra.mxu0 0.0
        %265 = vmatprep.subr.mxu0 0.0
        %266 = vmatpush1.msra.mxu0 0.0
        %267 = vmatprep.subr.mxu0 0.0
        %268 = vmatpush1.msra.mxu0 0.0
        %269 = vmatprep.subr.mxu0 0.0
        %270 = vmatpush1.msra.mxu0 0.0
        %271 = vmatprep.subr.mxu0 0.0
        %272 = vmatpush1.msra.mxu0 0.0
        %273 = vmatprep.subr.mxu0 0.0
        %274 = vmatpush1.msra.mxu0 0.0
        %275 = vmatprep.subr.mxu0 0.0
        %276 = vmatpush1.msra.mxu0 0.0
        %277 = vmatprep.subr.mxu0 0.0
        %278 = vmatpush1.msra.mxu0 0.0
        %279 = vmatprep.subr.mxu0 0.0
        %280 = vmatpush1.msra.mxu0 %v250
        %281 = vmatprep.subr.mxu0 0.0
        %282 = vmatpush1.msra.mxu0 %v249
        %283 = vmatprep.subr.mxu0 0.0
        %284 = vmatpush1.msra.mxu0 %v248
        %285 = vmatprep.subr.mxu0 0.0
        %286 = vmatpush1.msra.mxu0 %v247
        %287 = vmatprep.subr.mxu0 0.0
        %288 = vmatpush2.msra.mxu0 0.0
        %289 = vmatprep.subr.mxu0 0.0
        %290 = vmatpush2.msra.mxu0 0.0
        %291 = vmatprep.subr.mxu0 0.0
        %292 = vmatpush2.msra.mxu0 0.0
        %293 = vmatprep.subr.mxu0 0.0
        %294 = vmatpush2.msra.mxu0 0.0
        %295 = vmatprep.subr.mxu0 0.0
        %296 = vmatpush2.msra.mxu0 0.0
        %297 = vmatprep.subr.mxu0 0.0
        %298 = vmatpush2.msra.mxu0 0.0
        %299 = vmatprep.subr.mxu0 0.0
        %300 = vmatpush2.msra.mxu0 0.0
        %301 = vmatprep.subr.mxu0 0.0
        %302 = vmatpush2.msra.mxu0 0.0
        %303 = vmatprep.subr.mxu0 0.0
        %304 = vmatpush2.msra.mxu0 0.0
        %305 = vmatprep.subr.mxu0 0.0
        %306 = vmatpush2.msra.mxu0 0.0
        %307 = vmatprep.subr.mxu0 0.0
        %308 = vmatpush2.msra.mxu0 0.0
        %309 = vmatprep.subr.mxu0 0.0
        %310 = vmatpush2.msra.mxu0 0.0
        %311 = vmatprep.subr.mxu0 0.0
        %312 = vmatpush2.msra.mxu0 0.0
        %313 = vmatprep.subr.mxu0 0.0
        %314 = vmatpush2.msra.mxu0 0.0
        %315 = vmatprep.subr.mxu0 0.0
        %316 = vmatpush2.msra.mxu0 0.0
        %317 = vmatprep.subr.mxu0 0.0
        %318 = vmatpush2.msra.mxu0 0.0
        %319 = vmatprep.mubr.f32.mxu0 0.0
        %320 = vmatmul.mubr.f32.gmra.mxu0 %v253
        %v321 = vpop.f32.mrf.mxu0
        %v322 = vadd.f32 0.0, %v321
        %v323 = vpop.f32.mrf.mxu0
        %324 = vdwg.mxu0
        %325 = vst.msk [vmem:[%s231] sm:$0xff] %vm251, %v322
        %327 = vrot.lane.b32.xlu0 %v322, 96
        %v328 = vpop.permute.xlu0 %327
        %330 = vst.msk [vmem:[%s238] sm:$0xff] %vm251, %v328
        %331 = vrot.lane.b32.xlu0 %v322, 64
        %v332 = vpop.permute.xlu0 %331
        %334 = vst.msk [vmem:[%s245] sm:$0xff] %vm251, %v332
        %s335 = sand.u32 %s81, 1
        %s336 = scalar_lea.sflag [#allocation4], %s335
        %s337 = sand.u32 %s81, 1
        %s338 = smul.addr %s337, 8
        %s339 = scalar_lea.vmem [#allocation7], %s338
        %s340 = sand.u32 %s26, 1
        %s341 = scalar_lea.sflag [#allocation9], %s340
        %s342 = sand.u32 %s107, 1
        %s343 = smul.addr %s342, 8
        %s344 = scalar_lea.vmem [#allocation8], %s343
        %s345 = sand.u32 %s26, 1
        %s346 = scalar_lea.sflag [#allocation9], %s345
        %s347 = sand.u32 %s133, 1
        %s348 = smul.addr %s347, 8
        %s349 = scalar_lea.vmem [#allocation10], %s348
        // Predicated region
        $region37: #{tpu_custom_call.1} parent=27 // pred_check
          %p350 = pneg %p91
        $region38: #{tpu_custom_call.1} parent=27 // pred_check_branch
          %352 = sbr.rel (%p350) target = $region40
        $region39: #{tpu_custom_call.1} parent=27 // pred_region
          %s354 = ssub.s32 128, 128
          %355 = vsyncadd %s336, %s354
          %s356 = smul.addr %s26, 128
          %s357 = scalar_lea.hbm %s2, %s356
          %s359 = sshll.u32 %s339, 4
          %s360 = int_to_ptr.vmem [resolvable:$true] %s359
          %362 = dma.vmem_to_hbm [thread:$0]  %s360, 128, %s357, %s336
        $region40: #{tpu_custom_call.1} parent=27 // pred_fallthru
          _
        // Predicated region
        $region41: #{tpu_custom_call.1} parent=27 // pred_check
          %p363 = pneg %p117
        $region42: #{tpu_custom_call.1} parent=27 // pred_check_branch
          %365 = sbr.rel (%p363) target = $region44
        $region43: #{tpu_custom_call.1} parent=27 // pred_region
          %s367 = ssub.s32 128, 128
          %368 = vsyncadd %s341, %s367
          %s369 = smul.addr %s26, 128
          %s370 = scalar_lea.hbm %s3, %s369
          %s372 = sshll.u32 %s344, 4
          %s373 = int_to_ptr.vmem [resolvable:$true] %s372
          %375 = dma.vmem_to_hbm [thread:$0]  %s373, 128, %s370, %s341
        $region44: #{tpu_custom_call.1} parent=27 // pred_fallthru
          _
        // Predicated region
        $region45: #{tpu_custom_call.1} parent=27 // pred_check
          %p376 = pneg %p143
        $region46: #{tpu_custom_call.1} parent=27 // pred_check_branch
          %378 = sbr.rel (%p376) target = $region48
        $region47: #{tpu_custom_call.1} parent=27 // pred_region
          %s380 = ssub.s32 128, 128
          %381 = vsyncadd %s346, %s380
          %s382 = smul.addr %s26, 128
          %s383 = scalar_lea.hbm %s4, %s382
          %s385 = sshll.u32 %s349, 4
          %s386 = int_to_ptr.vmem [resolvable:$true] %s385
          %388 = dma.vmem_to_hbm [thread:$0]  %s386, 128, %s383, %s346
        $region48: #{tpu_custom_call.1} parent=27 // pred_fallthru
          _
      $region28: #{tpu_custom_call.1} parent=5 // pred_fallthru
        _
      %p389 = scmp.le.s32.totalorder 2, %s21
      // Predicated region
      $region49: #{tpu_custom_call.1} parent=5 // pred_check
        %p390 = pneg %p389
      $region50: #{tpu_custom_call.1} parent=5 // pred_check_branch
        %392 = sbr.rel (%p390) target = $region52
      $region51: #{tpu_custom_call.1} parent=5 // pred_region
        %s393 = ssub.s32 %s21, 2
        // Predicated region
        $region53: #{tpu_custom_call.1} parent=51 // pred_check
          %p394 = pneg %p97
        $region54: #{tpu_custom_call.1} parent=51 // pred_check_branch
          %396 = sbr.rel (%p394) target = $region56
        $region55: #{tpu_custom_call.1} parent=51 // pred_region
          %s397 = sand.u32 %s82, 1
          %s398 = scalar_lea.sflag [#allocation4], %s397
          %s399 = sand.u32 %s82, 1
          %s400 = smul.addr %s399, 8
          %s401 = scalar_lea.vmem [#allocation7], %s400
          %402 = dma.done %s398, 128
        $region56: #{tpu_custom_call.1} parent=51 // pred_fallthru
          _
        // Predicated region
        $region57: #{tpu_custom_call.1} parent=51 // pred_check
          %p403 = pneg %p123
        $region58: #{tpu_custom_call.1} parent=51 // pred_check_branch
          %405 = sbr.rel (%p403) target = $region60
        $region59: #{tpu_custom_call.1} parent=51 // pred_region
          %s406 = sand.u32 %s27, 1
          %s407 = scalar_lea.sflag [#allocation9], %s406
          %s408 = sand.u32 %s108, 1
          %s409 = smul.addr %s408, 8
          %s410 = scalar_lea.vmem [#allocation8], %s409
          %411 = dma.done %s407, 128
        $region60: #{tpu_custom_call.1} parent=51 // pred_fallthru
          _
        // Predicated region
        $region61: #{tpu_custom_call.1} parent=51 // pred_check
          %p412 = pneg %p149
        $region62: #{tpu_custom_call.1} parent=51 // pred_check_branch
          %414 = sbr.rel (%p412) target = $region64
        $region63: #{tpu_custom_call.1} parent=51 // pred_region
          %s415 = sand.u32 %s27, 1
          %s416 = scalar_lea.sflag [#allocation9], %s415
          %s417 = sand.u32 %s134, 1
          %s418 = smul.addr %s417, 8
          %s419 = scalar_lea.vmem [#allocation10], %s418
          %420 = dma.done %s416, 128
        $region64: #{tpu_custom_call.1} parent=51 // pred_fallthru
          _
      $region52: #{tpu_custom_call.1} parent=5 // pred_fallthru
        _
    $region6: #{tpu_custom_call.1} parent=1 // loop_footer
      %s25 = sadd.s32 1, %s21
    $region7: #{tpu_custom_call.1} parent=1 // loop_footer_branch
      %20 = sbr.rel target = $region3
    $region8: #{tpu_custom_call.1} parent=1 // loop_exit
      _
    %421 = vsyncpa [#allocation3], 1
    %s422 = scalar_lea.sflag [#allocation3], 1
    %423 = vsyncpa %s422, 1
    %424 = vsyncpa [#allocation6], 1
    %425 = vsyncpa [#allocation4], 1
    %s426 = scalar_lea.sflag [#allocation4], 1
    %427 = vsyncpa %s426, 1
    %428 = vsyncpa [#allocation9], 1
    %s429 = scalar_lea.sflag [#allocation9], 1
    %430 = vsyncpa %s429, 1

</llo_original>
